<compile_context>
chip_gen: v7x
topology: tpu7x:2x2x1
jax: 0.10.0
libtpu: 0.0.40
codegen_flags: <defaults>
</compile_context>

<pallas_src>
import jax
import jax.numpy as jnp
from jax.experimental import pallas as pl
from jax.experimental.pallas import tpu as pltpu


def mlp_kernel(x_ref, w1_ref, bw_ref, b2_ref, o_ref):
    # Hidden layer on the MXU, batch on lanes: (H, D) . (TM, D)^T -> (H, TM).
    # Operands may be bf16; accumulation is forced to f32.
    h = jax.lax.dot_general(
        w1_ref[...], x_ref[...],
        dimension_numbers=(((1,), (1,)), ((), ())),
        preferred_element_type=jnp.float32,
    )

    b1 = bw_ref[:, 0:1]                                    # (H, 1) f32 bias
    w2 = bw_ref[:, 1:2]                                    # (H, 1) f32 out-proj weights
    h = jnp.maximum(h + b1, 0.0)                           # bias bcast over lanes; ReLU (f32 VPU)

    # Output layer (H -> 1): VPU multiply + sublane reduce (XLU) instead of a
    # degenerate 1-column MXU matmul -> already a lane-dense (1, TM) row.
    y = jnp.sum(h * w2, axis=0, keepdims=True)             # (1, TM) f32
    y = y + b2_ref[0]                                      # scalar bias from SMEM

    # sigmoid(y) = 1 / (1 + exp(-y)); approx=True keeps the reciprocal on the
    # EUP slot.  exp overflow for very negative y -> 1/inf = 0 (correct limit).
    o_ref[...] = pl.reciprocal(1.0 + jnp.exp(-y), approx=True).astype(o_ref.dtype)


def neural_net2_forward(x, w1, b1, w2, b2, *, tm=512, mxu_dtype=jnp.bfloat16):
    """Forward pass of NeuralNet2: sigmoid(linear2(relu(linear1(x)))).

    Args (PyTorch parameter layouts):
      x : (B, D)  input batch
      w1: (H, D)  linear1.weight     b1: (H,)  linear1.bias
      w2: (1, H)  linear2.weight     b2: (1,)  linear2.bias
    Returns: (B, 1) in x.dtype.
    """
    B, D = x.shape
    H = w1.shape[0]
    out_dtype = x.dtype

    # bf16 MXU operands (HBM-bytes + MXU-rate win on v6e/v7x; MXU-only bf16 on
    # v5e).  Epilogue parameters stay f32.
    x_m = x.astype(mxu_dtype)
    w1_m = w1.astype(mxu_dtype)
    bw = jnp.stack([b1, w2.reshape(H)], axis=1).astype(jnp.float32)   # (H, 2) packed
    b2f = b2.astype(jnp.float32)

    # --- batch tile selection -------------------------------------------------
    # Per-grid-step overhead (~0.35 us) dominates at 128-wide tiles, so default
    # to 512 and shrink only if the VMEM footprint (resident weights + 2x x
    # double-buffers + output row) would blow a conservative budget that also
    # fits v7x's 64 MiB physical VMEM.
    itemsize = jnp.dtype(mxu_dtype).itemsize
    resident = 2 * H * D * itemsize + 2 * max(H, 8) * 128 * 4          # w1 + padded (H,2)
    budget = 24 * 2**20
    while tm > 128 and resident + 2 * tm * D * itemsize + 2 * 8 * tm * 4 > budget:
        tm //= 2
    tm = min(tm, B)               # single-block fast path when the batch fits one tile
    # NOTE: at very large B keep grid >= 8-16 steps so each v7x TensorCore gets
    # >= 4 pipelined steps; don't grow tm until the grid collapses to 1-2 steps.

    grid_steps = pl.cdiv(B, tm)
    vmem_limit = int(min(64 * 2**20,
                         max(32 * 2**20,
                             2 * (resident + 2 * tm * D * itemsize + 2 * 8 * tm * 4))))

    out_row = pl.pallas_call(
        mlp_kernel,
        out_shape=jax.ShapeDtypeStruct((1, B), jnp.float32),           # lane-dense output
        grid=(grid_steps,),
        in_specs=[
            pl.BlockSpec((tm, D), lambda i: (i, 0)),                   # x tile (streamed)
            pl.BlockSpec((H, D), lambda i: (0, 0)),                    # w1 (VMEM-resident)
            pl.BlockSpec((H, 2), lambda i: (0, 0)),                    # packed [b1 | w2]
            pl.BlockSpec(memory_space=pltpu.MemorySpace.SMEM),         # b2 scalar
        ],
        out_specs=pl.BlockSpec((1, tm), lambda i: (0, i)),
        compiler_params=pltpu.CompilerParams(
            dimension_semantics=("parallel",),                         # megacore split on v7x
            vmem_limit_bytes=vmem_limit,
        ),
    )(x_m, w1_m, bw, b2f)

    return out_row.reshape(B, 1).astype(out_dtype)


if __name__ == "__main__":
    # Small but hardware-aligned shapes implied by the module:
    #   Linear(input_size, hidden_size) -> ReLU -> Linear(hidden_size, 1) -> Sigmoid
    batch, input_size, hidden_size = 256, 64, 128

    key = jax.random.PRNGKey(0)
    kx, kw1, kb1, kw2, kb2 = jax.random.split(key, 5)

    x = jax.random.normal(kx, (batch, input_size), dtype=jnp.float32)

    # Deterministic synthetic parameters (PyTorch-style uniform fan-in init),
    # stored in PyTorch-native layouts.
    bound1 = 1.0 / (input_size ** 0.5)
    w1 = jax.random.uniform(kw1, (hidden_size, input_size), jnp.float32, -bound1, bound1)
    b1 = jax.random.uniform(kb1, (hidden_size,), jnp.float32, -bound1, bound1)
    bound2 = 1.0 / (hidden_size ** 0.5)
    w2 = jax.random.uniform(kw2, (1, hidden_size), jnp.float32, -bound2, bound2)
    b2 = jax.random.uniform(kb2, (1,), jnp.float32, -bound2, bound2)

    out = jax.block_until_ready(neural_net2_forward(x, w1, b1, w2, b2))

    # Pure-JAX f32 reference of the PyTorch forward semantics.  Tolerance
    # covers the bf16 MXU operands + approx reciprocal in the kernel.
    ref = jax.nn.sigmoid(jnp.maximum(x @ w1.T + b1, 0.0) @ w2.T + b2)
    assert out.shape == (batch, 1)
    assert jnp.allclose(out, ref, atol=1e-2, rtol=1e-2), "mismatch vs reference"

    print("KERNEL_OK")
</pallas_src>

<mosaic_0001>
module attributes {stable_mosaic.version = 11 : i64} {
  func.func @mlp_kernel(%arg0: i32, %arg1: memref<256x64xbf16, #tpu.memory_space<vmem>>, %arg2: memref<128x64xbf16, #tpu.memory_space<vmem>>, %arg3: memref<128x2xf32, #tpu.memory_space<vmem>>, %arg4: memref<1xf32, #tpu.memory_space<smem>>, %arg5: memref<1x256xf32, #tpu.memory_space<vmem>>) attributes {dimension_semantics = [#tpu.dimension_semantics<parallel>], iteration_bounds = array<i64: 1>, scalar_prefetch = 0 : i64, scratch_operands = 0 : i64, tpu.core_type = #tpu.core_type<tc>, window_params = [{transform_indices = @transform_0, window_bounds = array<i64: 256, 64>}, {pipeline_mode = #tpu.pipeline_mode<synchronous>, transform_indices = @transform_1, window_bounds = array<i64: 128, 64>}, {pipeline_mode = #tpu.pipeline_mode<synchronous>, transform_indices = @transform_2, window_bounds = array<i64: 128, 2>}, {transform_indices = @transform_3, window_bounds = array<i64: 1>}, {transform_indices = @transform_4, window_bounds = array<i64: 1, 256>}]} {
    %c0 = arith.constant 0 : index
    %c0_0 = arith.constant 0 : index
    %0 = vector.load %arg2[%c0, %c0_0] : memref<128x64xbf16, #tpu.memory_space<vmem>>, vector<128x64xbf16>
    %c0_1 = arith.constant 0 : index
    %c0_2 = arith.constant 0 : index
    %1 = vector.load %arg1[%c0_1, %c0_2] : memref<256x64xbf16, #tpu.memory_space<vmem>>, vector<256x64xbf16>
    %cst = arith.constant dense<0.000000e+00> : vector<128x256xf32>
    %2 = tpu.matmul %0, %1, %cst {dimension_numbers = #tpu.dot_dimension_numbers<[1], [1], [0], [0], [0, 0, 1, 0], [], []>} : vector<128x64xbf16>, vector<256x64xbf16>, vector<128x256xf32> -> vector<128x256xf32>
    %c0_3 = arith.constant 0 : index
    %c0_4 = arith.constant 0 : index
    %3 = vector.load %arg3[%c0_3, %c0_4] : memref<128x2xf32, #tpu.memory_space<vmem>>, vector<128x1xf32>
    %c0_5 = arith.constant 0 : index
    %c1 = arith.constant 1 : index
    %4 = vector.load %arg3[%c0_5, %c1] : memref<128x2xf32, #tpu.memory_space<vmem>>, vector<128x1xf32>
    %5 = vector.broadcast %3 : vector<128x1xf32> to vector<128x256xf32>
    %6 = arith.addf %2, %5 : vector<128x256xf32>
    %cst_6 = arith.constant 0.000000e+00 : f32
    %7 = vector.broadcast %cst_6 : f32 to vector<128x256xf32>
    %8 = arith.maximumf %6, %7 : vector<128x256xf32>
    %9 = vector.broadcast %4 : vector<128x1xf32> to vector<128x256xf32>
    %10 = arith.mulf %8, %9 : vector<128x256xf32>
    %cst_7 = arith.constant dense<0.000000e+00> : vector<256xf32>
    %11 = vector.multi_reduction <add>, %10, %cst_7 [0] : vector<128x256xf32> to vector<256xf32>
    %12 = vector.shape_cast %11 : vector<256xf32> to vector<1x256xf32>
    %c0_8 = arith.constant 0 : index
    %13 = memref.load %arg4[%c0_8] : memref<1xf32, #tpu.memory_space<smem>>
    %14 = vector.broadcast %13 : f32 to vector<1x256xf32>
    %15 = arith.addf %12, %14 : vector<1x256xf32>
    %cst_9 = arith.constant 0.000000e+00 : f32
    %16 = vector.broadcast %cst_9 : f32 to vector<1x256xf32>
    %17 = arith.subf %16, %15 : vector<1x256xf32>
    %18 = math.exp %17 : vector<1x256xf32>
    %cst_10 = arith.constant 1.000000e+00 : f32
    %19 = vector.broadcast %cst_10 : f32 to vector<1x256xf32>
    %20 = arith.addf %19, %18 : vector<1x256xf32>
    %21 = tpu.reciprocal %20 {approx = true} : vector<1x256xf32> -> vector<1x256xf32>
    %c0_11 = arith.constant 0 : index
    %c0_12 = arith.constant 0 : index
    %22 = vector.load %arg5[%c0_11, %c0_12] : memref<1x256xf32, #tpu.memory_space<vmem>>, vector<1x256xf32>
    tpu.vector_store %arg5[%c0_11, %c0_12], %21 {strides = array<i32>} : memref<1x256xf32, #tpu.memory_space<vmem>>, vector<1x256xf32>,
    return
  }
  func.func @transform_0(%arg0: i32) -> (i32, i32) {
    %c0_i32 = arith.constant 0 : i32
    %c0_i32_0 = arith.constant 0 : i32
    return %arg0, %c0_i32 : i32, i32
  }
  func.func @transform_1(%arg0: i32) -> (i32, i32) {
    %c0_i32 = arith.constant 0 : i32
    %c0_i32_0 = arith.constant 0 : i32
    %c0_i32_1 = arith.constant 0 : i32
    return %c0_i32, %c0_i32_0 : i32, i32
  }
  func.func @transform_2(%arg0: i32) -> (i32, i32) {
    %c0_i32 = arith.constant 0 : i32
    %c0_i32_0 = arith.constant 0 : i32
    %c0_i32_1 = arith.constant 0 : i32
    return %c0_i32, %c0_i32_0 : i32, i32
  }
  func.func @transform_3(%arg0: i32) -> i32 {
    %c0_i32 = arith.constant 0 : i32
    %c0_i32_0 = arith.constant 0 : i32
    return %c0_i32 : i32
  }
  func.func @transform_4(%arg0: i32) -> (i32, i32) {
    %c0_i32 = arith.constant 0 : i32
    %c0_i32_0 = arith.constant 0 : i32
    return %c0_i32, %arg0 : i32, i32
  }
}

</mosaic_0001>

<llo_original>
// kernel: tpu_custom_call.1
$region0: #{tpu_custom_call.1}
  #allocation0 [shape = 'u32[]', space=smem, size = 0x4, offset = 0x4, fixed_abs, tag = 'smem constant byte address 0x4 - core index']
  #allocation1 [shape = 'u32[144,128]{1,0:T(1,128)}', space=vmem, size = 0x12000, scoped, tag = 'internal scratch']
  #allocation2 [shape = 'f32[1]{0:T(128)S(6)}', space=smem, size = 0x200, scoped, tag = 'scoped memory for tpu_custom_call.1']
  %s0 = inlined_call_operand.vmem [shape: bf16[256,64], index: 0, kind: input, shape index: {}]
  %s1 = inlined_call_operand.vmem [shape: bf16[128,64], index: 1, kind: input, shape index: {}]
  %s2 = inlined_call_operand.vmem [shape: f32[128,2], index: 2, kind: input, shape index: {}]
  %s3 = inlined_call_operand.<no memory space> [shape: f32[1], index: 3, kind: input, shape index: {}]
  %s4 = inlined_call_operand.hbm [shape: f32[1,256], index: 4, kind: output, shape index: {}]
  %s5 = sld [smem:[#allocation0]]
  $region26: #{tpu_custom_call.1} parent=0
    _
  %s7 = ssub.s32 1, %s5
  %s8 = scalar_select 0, %s7, %s5
  %9 = sst [smem:[#allocation2]] %s3
  $region1: #{tpu_custom_call.1} parent=0
    #allocation3 [shape = 'u8[1024]{0}', space=vmem, size = 0x400, scoped, tag = 'output window, operand 0, single buffered']
    #allocation4 [shape = 's32[1]{0}', space=sflag, size = 0x4, scoped, tag = 'scoped memory for tpu_custom_call.1']
    %10 = vsyncpa [#allocation4], 0
    // Predicated region
    $region2: #{tpu_custom_call.1} parent=1 // pred_check
      _
    $region3: #{tpu_custom_call.1} parent=1 // pred_check_branch
      %12 = sbr.rel (0) target = $region5
    $region4: #{tpu_custom_call.1} parent=1 // pred_region
      _
    $region5: #{tpu_custom_call.1} parent=1 // pred_fallthru
      _
    // Predicated region
    $region6: #{tpu_custom_call.1} parent=1 // pred_check
      _
    $region7: #{tpu_custom_call.1} parent=1 // pred_check_branch
      %14 = sbr.rel (0) target = $region9
    $region8: #{tpu_custom_call.1} parent=1 // pred_region
      _
    $region9: #{tpu_custom_call.1} parent=1 // pred_fallthru
      _
    // Predicated region
    $region10: #{tpu_custom_call.1} parent=1 // pred_check
      _
    $region11: #{tpu_custom_call.1} parent=1 // pred_check_branch
      %16 = sbr.rel (0) target = $region13
    $region12: #{tpu_custom_call.1} parent=1 // pred_region
      _
    $region13: #{tpu_custom_call.1} parent=1 // pred_fallthru
      _
    // Predicated region
    $region14: #{tpu_custom_call.1} parent=1 // pred_check
      _
    $region15: #{tpu_custom_call.1} parent=1 // pred_check_branch
      %18 = sbr.rel (0) target = $region17
    $region16: #{tpu_custom_call.1} parent=1 // pred_region
      _
    $region17: #{tpu_custom_call.1} parent=1 // pred_fallthru
      _
    %v20 = vld [vmem:[%s1] sm:$0xf]
    %v21 = vld [vmem:[%s1 + $0x4] sm:$0xf]
    %v22 = vld [vmem:[%s1 + $0x8] sm:$0xf]
    %v23 = vld [vmem:[%s1 + $0xc] sm:$0xf]
    %v24 = vld [vmem:[%s1 + $0x10] sm:$0xf]
    %v25 = vld [vmem:[%s1 + $0x14] sm:$0xf]
    %v26 = vld [vmem:[%s1 + $0x18] sm:$0xf]
    %v27 = vld [vmem:[%s1 + $0x1c] sm:$0xf]
    %v28 = vld [vmem:[%s1 + $0x20] sm:$0xf]
    %v29 = vld [vmem:[%s1 + $0x24] sm:$0xf]
    %v30 = vld [vmem:[%s1 + $0x28] sm:$0xf]
    %v31 = vld [vmem:[%s1 + $0x2c] sm:$0xf]
    %v32 = vld [vmem:[%s1 + $0x30] sm:$0xf]
    %v33 = vld [vmem:[%s1 + $0x34] sm:$0xf]
    %v34 = vld [vmem:[%s1 + $0x38] sm:$0xf]
    %v35 = vld [vmem:[%s1 + $0x3c] sm:$0xf]
    %v36 = vld [vmem:[%s0] sm:$0xf]
    %v37 = vld [vmem:[%s0 + $0x4] sm:$0xf]
    %v38 = vld [vmem:[%s0 + $0x8] sm:$0xf]
    %v39 = vld [vmem:[%s0 + $0xc] sm:$0xf]
    %v40 = vld [vmem:[%s0 + $0x10] sm:$0xf]
    %v41 = vld [vmem:[%s0 + $0x14] sm:$0xf]
    %v42 = vld [vmem:[%s0 + $0x18] sm:$0xf]
    %v43 = vld [vmem:[%s0 + $0x1c] sm:$0xf]
    %v44 = vld [vmem:[%s0 + $0x20] sm:$0xf]
    %v45 = vld [vmem:[%s0 + $0x24] sm:$0xf]
    %v46 = vld [vmem:[%s0 + $0x28] sm:$0xf]
    %v47 = vld [vmem:[%s0 + $0x2c] sm:$0xf]
    %v48 = vld [vmem:[%s0 + $0x30] sm:$0xf]
    %v49 = vld [vmem:[%s0 + $0x34] sm:$0xf]
    %v50 = vld [vmem:[%s0 + $0x38] sm:$0xf]
    %v51 = vld [vmem:[%s0 + $0x3c] sm:$0xf]
    %v52 = vld [vmem:[%s0 + $0x40] sm:$0xf]
    %v53 = vld [vmem:[%s0 + $0x44] sm:$0xf]
    %v54 = vld [vmem:[%s0 + $0x48] sm:$0xf]
    %v55 = vld [vmem:[%s0 + $0x4c] sm:$0xf]
    %v56 = vld [vmem:[%s0 + $0x50] sm:$0xf]
    %v57 = vld [vmem:[%s0 + $0x54] sm:$0xf]
    %v58 = vld [vmem:[%s0 + $0x58] sm:$0xf]
    %v59 = vld [vmem:[%s0 + $0x5c] sm:$0xf]
    %v60 = vld [vmem:[%s0 + $0x60] sm:$0xf]
    %v61 = vld [vmem:[%s0 + $0x64] sm:$0xf]
    %v62 = vld [vmem:[%s0 + $0x68] sm:$0xf]
    %v63 = vld [vmem:[%s0 + $0x6c] sm:$0xf]
    %v64 = vld [vmem:[%s0 + $0x70] sm:$0xf]
    %v65 = vld [vmem:[%s0 + $0x74] sm:$0xf]
    %v66 = vld [vmem:[%s0 + $0x78] sm:$0xf]
    %v67 = vld [vmem:[%s0 + $0x7c] sm:$0xf]
    %v68 = vld [vmem:[%s2] sm:$0xff]
    %v69 = vld [vmem:[%s2 + $0x8] sm:$0xff]
    %v70 = vld [vmem:[%s2 + $0x10] sm:$0xff]
    %v71 = vld [vmem:[%s2 + $0x18] sm:$0xff]
    %v72 = vld [vmem:[%s2 + $0x20] sm:$0xff]
    %v73 = vld [vmem:[%s2 + $0x28] sm:$0xff]
    %v74 = vld [vmem:[%s2 + $0x30] sm:$0xff]
    %v75 = vld [vmem:[%s2 + $0x38] sm:$0xff]
    %v76 = vld [vmem:[%s2 + $0x40] sm:$0xff]
    %v77 = vld [vmem:[%s2 + $0x48] sm:$0xff]
    %v78 = vld [vmem:[%s2 + $0x50] sm:$0xff]
    %v79 = vld [vmem:[%s2 + $0x58] sm:$0xff]
    %v80 = vld [vmem:[%s2 + $0x60] sm:$0xff]
    %v81 = vld [vmem:[%s2 + $0x68] sm:$0xff]
    %v82 = vld [vmem:[%s2 + $0x70] sm:$0xff]
    %v83 = vld [vmem:[%s2 + $0x78] sm:$0xff]
    %85 = vset.pattern.permute.xlu0 0
    %86 = vperm.xlu0 %85, %v68
    %v87 = vpop.permute.xlu0 %86
    %90 = vset.pattern.permute.xlu0 0
    %91 = vperm.xlu0 %90, %v69
    %v92 = vpop.permute.xlu0 %91
    %95 = vset.pattern.permute.xlu0 0
    %96 = vperm.xlu0 %95, %v70
    %v97 = vpop.permute.xlu0 %96
    %100 = vset.pattern.permute.xlu0 0
    %101 = vperm.xlu0 %100, %v71
    %v102 = vpop.permute.xlu0 %101
    %105 = vset.pattern.permute.xlu0 0
    %106 = vperm.xlu0 %105, %v72
    %v107 = vpop.permute.xlu0 %106
    %110 = vset.pattern.permute.xlu0 0
    %111 = vperm.xlu0 %110, %v73
    %v112 = vpop.permute.xlu0 %111
    %115 = vset.pattern.permute.xlu0 0
    %116 = vperm.xlu0 %115, %v74
    %v117 = vpop.permute.xlu0 %116
    %120 = vset.pattern.permute.xlu0 0
    %121 = vperm.xlu0 %120, %v75
    %v122 = vpop.permute.xlu0 %121
    %125 = vset.pattern.permute.xlu0 0
    %126 = vperm.xlu0 %125, %v76
    %v127 = vpop.permute.xlu0 %126
    %130 = vset.pattern.permute.xlu0 0
    %131 = vperm.xlu0 %130, %v77
    %v132 = vpop.permute.xlu0 %131
    %135 = vset.pattern.permute.xlu0 0
    %136 = vperm.xlu0 %135, %v78
    %v137 = vpop.permute.xlu0 %136
    %140 = vset.pattern.permute.xlu0 0
    %141 = vperm.xlu0 %140, %v79
    %v142 = vpop.permute.xlu0 %141
    %145 = vset.pattern.permute.xlu0 0
    %146 = vperm.xlu0 %145, %v80
    %v147 = vpop.permute.xlu0 %146
    %150 = vset.pattern.permute.xlu0 0
    %151 = vperm.xlu0 %150, %v81
    %v152 = vpop.permute.xlu0 %151
    %155 = vset.pattern.permute.xlu0 0
    %156 = vperm.xlu0 %155, %v82
    %v157 = vpop.permute.xlu0 %156
    %160 = vset.pattern.permute.xlu0 0
    %161 = vperm.xlu0 %160, %v83
    %v162 = vpop.permute.xlu0 %161
    %v180 = vunpack.c.l.b16 %v20
    %v181 = vunpack.c.l.b16 %v21
    %v182 = vunpack.c.l.b16 %v22
    %v183 = vunpack.c.l.b16 %v23
    %v184 = vunpack.c.l.b16 %v24
    %v185 = vunpack.c.l.b16 %v25
    %v186 = vunpack.c.l.b16 %v26
    %v187 = vunpack.c.l.b16 %v27
    %v188 = vunpack.c.l.b16 %v28
    %v189 = vunpack.c.l.b16 %v29
    %v190 = vunpack.c.l.b16 %v30
    %v191 = vunpack.c.l.b16 %v31
    %v192 = vunpack.c.l.b16 %v32
    %v193 = vunpack.c.l.b16 %v33
    %v194 = vunpack.c.l.b16 %v34
    %v195 = vunpack.c.l.b16 %v35
    %v196 = vpack.c.b16 %v181, %v180
    %v197 = vpack.c.b16 %v183, %v182
    %v198 = vpack.c.b16 %v185, %v184
    %v199 = vpack.c.b16 %v187, %v186
    %v200 = vpack.c.b16 %v189, %v188
    %v201 = vpack.c.b16 %v191, %v190
    %v202 = vpack.c.b16 %v193, %v192
    %v203 = vpack.c.b16 %v195, %v194
    %v236 = vunpack.c.l.b16 %v36
    %v237 = vunpack.c.l.b16 %v37
    %v238 = vunpack.c.l.b16 %v38
    %v239 = vunpack.c.l.b16 %v39
    %v240 = vunpack.c.l.b16 %v40
    %v241 = vunpack.c.l.b16 %v41
    %v242 = vunpack.c.l.b16 %v42
    %v243 = vunpack.c.l.b16 %v43
    %v244 = vunpack.c.l.b16 %v44
    %v245 = vunpack.c.l.b16 %v45
    %v246 = vunpack.c.l.b16 %v46
    %v247 = vunpack.c.l.b16 %v47
    %v248 = vunpack.c.l.b16 %v48
    %v249 = vunpack.c.l.b16 %v49
    %v250 = vunpack.c.l.b16 %v50
    %v251 = vunpack.c.l.b16 %v51
    %v252 = vunpack.c.l.b16 %v52
    %v253 = vunpack.c.l.b16 %v53
    %v254 = vunpack.c.l.b16 %v54
    %v255 = vunpack.c.l.b16 %v55
    %v256 = vunpack.c.l.b16 %v56
    %v257 = vunpack.c.l.b16 %v57
    %v258 = vunpack.c.l.b16 %v58
    %v259 = vunpack.c.l.b16 %v59
    %v260 = vunpack.c.l.b16 %v60
    %v261 = vunpack.c.l.b16 %v61
    %v262 = vunpack.c.l.b16 %v62
    %v263 = vunpack.c.l.b16 %v63
    %v264 = vunpack.c.l.b16 %v64
    %v265 = vunpack.c.l.b16 %v65
    %v266 = vunpack.c.l.b16 %v66
    %v267 = vunpack.c.l.b16 %v67
    %v268 = vpack.c.b16 %v237, %v236
    %v269 = vpack.c.b16 %v239, %v238
    %v270 = vpack.c.b16 %v241, %v240
    %v271 = vpack.c.b16 %v243, %v242
    %v272 = vpack.c.b16 %v245, %v244
    %v273 = vpack.c.b16 %v247, %v246
    %v274 = vpack.c.b16 %v249, %v248
    %v275 = vpack.c.b16 %v251, %v250
    %v276 = vpack.c.b16 %v253, %v252
    %v277 = vpack.c.b16 %v255, %v254
    %v278 = vpack.c.b16 %v257, %v256
    %v279 = vpack.c.b16 %v259, %v258
    %v280 = vpack.c.b16 %v261, %v260
    %v281 = vpack.c.b16 %v263, %v262
    %v282 = vpack.c.b16 %v265, %v264
    %v283 = vpack.c.b16 %v267, %v266
    %vm284 = vcmask 523264
    %v286 = vsel %vm284, %v196, 0
    %v289 = vsel %vm284, %v197, 0
    %v292 = vsel %vm284, %v198, 0
    %v295 = vsel %vm284, %v199, 0
    %v298 = vsel %vm284, %v200, 0
    %v301 = vsel %vm284, %v201, 0
    %v304 = vsel %vm284, %v202, 0
    %v307 = vsel %vm284, %v203, 0
    %v310 = vsel %vm284, %v268, 0
    %v313 = vsel %vm284, %v269, 0
    %v316 = vsel %vm284, %v270, 0
    %v319 = vsel %vm284, %v271, 0
    %v322 = vsel %vm284, %v272, 0
    %v325 = vsel %vm284, %v273, 0
    %v328 = vsel %vm284, %v274, 0
    %v331 = vsel %vm284, %v275, 0
    %v334 = vsel %vm284, %v276, 0
    %v337 = vsel %vm284, %v277, 0
    %v340 = vsel %vm284, %v278, 0
    %v343 = vsel %vm284, %v279, 0
    %v346 = vsel %vm284, %v280, 0
    %v349 = vsel %vm284, %v281, 0
    %v352 = vsel %vm284, %v282, 0
    %v355 = vsel %vm284, %v283, 0
    %357 = vmatprep.subr.bf16.mxu0 0
    %358 = vmatpush1.bf16.xpose.msra.mxu0 %v310
    %359 = vmatprep.subr.bf16.mxu0 0
    %360 = vmatpush1.bf16.xpose.msra.mxu0 %v313
    %361 = vmatprep.subr.bf16.mxu0 0
    %362 = vmatpush1.bf16.xpose.msra.mxu0 %v316
    %363 = vmatprep.subr.bf16.mxu0 0
    %364 = vmatpush1.bf16.xpose.msra.mxu0 %v319
    %365 = vmatprep.subr.bf16.mxu0 0
    %366 = vmatpush1.bf16.xpose.msra.mxu0 %v322
    %367 = vmatprep.subr.bf16.mxu0 0
    %368 = vmatpush1.bf16.xpose.msra.mxu0 %v325
    %369 = vmatprep.subr.bf16.mxu0 0
    %370 = vmatpush1.bf16.xpose.msra.mxu0 %v328
    %371 = vmatprep.subr.bf16.mxu0 0
    %372 = vmatpush1.bf16.xpose.msra.mxu0 %v331
    %373 = vmatprep.subr.bf16.mxu0 0
    %374 = vmatpush1.bf16.xpose.msra.mxu0 %v334
    %375 = vmatprep.subr.bf16.mxu0 0
    %376 = vmatpush1.bf16.xpose.msra.mxu0 %v337
    %377 = vmatprep.subr.bf16.mxu0 0
    %378 = vmatpush1.bf16.xpose.msra.mxu0 %v340
    %379 = vmatprep.subr.bf16.mxu0 0
    %380 = vmatpush1.bf16.xpose.msra.mxu0 %v343
    %381 = vmatprep.subr.bf16.mxu0 0
    %382 = vmatpush1.bf16.xpose.msra.mxu0 %v346
    %383 = vmatprep.subr.bf16.mxu0 0
    %384 = vmatpush1.bf16.xpose.msra.mxu0 %v349
    %385 = vmatprep.subr.bf16.mxu0 0
    %386 = vmatpush1.bf16.xpose.msra.mxu0 %v352
    %387 = vmatprep.subr.bf16.mxu0 0
    %388 = vmatpush1.bf16.xpose.msra.mxu0 %v355
    %389 = vmatprep.mubr.bf16.mxu0 0
    %390 = vmatmul.mubr.bf16.gmra.mrb[0].mxu0 %v286
    %v391 = vpop.f32.mrb[0].mxu0
    %v392 = vadd.f32 %v87, %v391
    %v393 = vpop.f32.mrb[0].mxu0
    %v394 = vadd.f32 %v87, %v393
    %v395 = vpop.f32.mrb[0].mxu0
    %v396 = vadd.f32 %v92, %v395
    %v397 = vpop.f32.mrb[0].mxu0
    %v398 = vadd.f32 %v92, %v397
    %399 = vmatprep.mubr.bf16.mxu0 0
    %400 = vmatmul.mubr.bf16.gmra.mrb[0].mxu0 %v289
    %v401 = vpop.f32.mrb[0].mxu0
    %v402 = vadd.f32 %v97, %v401
    %v403 = vpop.f32.mrb[0].mxu0
    %v404 = vadd.f32 %v97, %v403
    %v405 = vpop.f32.mrb[0].mxu0
    %v406 = vadd.f32 %v102, %v405
    %v407 = vpop.f32.mrb[0].mxu0
    %v408 = vadd.f32 %v102, %v407
    %409 = vmatprep.mubr.bf16.mxu0 0
    %410 = vmatmul.mubr.bf16.gmra.mrb[0].mxu0 %v292
    %v411 = vpop.f32.mrb[0].mxu0
    %v412 = vadd.f32 %v107, %v411
    %v413 = vpop.f32.mrb[0].mxu0
    %v414 = vadd.f32 %v107, %v413
    %v415 = vpop.f32.mrb[0].mxu0
    %v416 = vadd.f32 %v112, %v415
    %v417 = vpop.f32.mrb[0].mxu0
    %v418 = vadd.f32 %v112, %v417
    %419 = vmatprep.mubr.bf16.mxu0 0
    %420 = vmatmul.mubr.bf16.gmra.mrb[0].mxu0 %v295
    %v421 = vpop.f32.mrb[0].mxu0
    %v422 = vadd.f32 %v117, %v421
    %v423 = vpop.f32.mrb[0].mxu0
    %v424 = vadd.f32 %v117, %v423
    %v425 = vpop.f32.mrb[0].mxu0
    %v426 = vadd.f32 %v122, %v425
    %v427 = vpop.f32.mrb[0].mxu0
    %v428 = vadd.f32 %v122, %v427
    %429 = vmatprep.mubr.bf16.mxu0 0
    %430 = vmatmul.mubr.bf16.gmra.mrb[0].mxu0 %v298
    %v431 = vpop.f32.mrb[0].mxu0
    %v432 = vadd.f32 %v127, %v431
    %v433 = vpop.f32.mrb[0].mxu0
    %v434 = vadd.f32 %v127, %v433
    %v435 = vpop.f32.mrb[0].mxu0
    %v436 = vadd.f32 %v132, %v435
    %v437 = vpop.f32.mrb[0].mxu0
    %v438 = vadd.f32 %v132, %v437
    %439 = vmatprep.mubr.bf16.mxu0 0
    %440 = vmatmul.mubr.bf16.gmra.mrb[0].mxu0 %v301
    %v441 = vpop.f32.mrb[0].mxu0
    %v442 = vadd.f32 %v137, %v441
    %v443 = vpop.f32.mrb[0].mxu0
    %v444 = vadd.f32 %v137, %v443
    %v445 = vpop.f32.mrb[0].mxu0
    %v446 = vadd.f32 %v142, %v445
    %v447 = vpop.f32.mrb[0].mxu0
    %v448 = vadd.f32 %v142, %v447
    %449 = vmatprep.mubr.bf16.mxu0 0
    %450 = vmatmul.mubr.bf16.gmra.mrb[0].mxu0 %v304
    %v451 = vpop.f32.mrb[0].mxu0
    %v452 = vadd.f32 %v147, %v451
    %v453 = vpop.f32.mrb[0].mxu0
    %v454 = vadd.f32 %v147, %v453
    %v455 = vpop.f32.mrb[0].mxu0
    %v456 = vadd.f32 %v152, %v455
    %v457 = vpop.f32.mrb[0].mxu0
    %v458 = vadd.f32 %v152, %v457
    %459 = vmatprep.mubr.bf16.mxu0 0
    %460 = vmatmul.mubr.bf16.gmra.mrb[0].mxu0 %v307
    %v461 = vpop.f32.mrb[0].mxu0
    %v462 = vadd.f32 %v157, %v461
    %v463 = vpop.f32.mrb[0].mxu0
    %v464 = vadd.f32 %v157, %v463
    %v465 = vpop.f32.mrb[0].mxu0
    %v466 = vadd.f32 %v162, %v465
    %v467 = vpop.f32.mrb[0].mxu0
    %v468 = vadd.f32 %v162, %v467
    %469 = vdwg.mxu0
    %v470 = vmax.f32 %v392, 0.0
    %v471 = vmax.f32 %v394, 0.0
    %v472 = vmax.f32 %v396, 0.0
    %v473 = vmax.f32 %v398, 0.0
    %v474 = vmax.f32 %v402, 0.0
    %v475 = vmax.f32 %v404, 0.0
    %v476 = vmax.f32 %v406, 0.0
    %v477 = vmax.f32 %v408, 0.0
    %v478 = vmax.f32 %v412, 0.0
    %v479 = vmax.f32 %v414, 0.0
    %v480 = vmax.f32 %v416, 0.0
    %v481 = vmax.f32 %v418, 0.0
    %v482 = vmax.f32 %v422, 0.0
    %v483 = vmax.f32 %v424, 0.0
    %v484 = vmax.f32 %v426, 0.0
    %v485 = vmax.f32 %v428, 0.0
    %v486 = vmax.f32 %v432, 0.0
    %v487 = vmax.f32 %v434, 0.0
    %v488 = vmax.f32 %v436, 0.0
    %v489 = vmax.f32 %v438, 0.0
    %v490 = vmax.f32 %v442, 0.0
    %v491 = vmax.f32 %v444, 0.0
    %v492 = vmax.f32 %v446, 0.0
    %v493 = vmax.f32 %v448, 0.0
    %v494 = vmax.f32 %v452, 0.0
    %v495 = vmax.f32 %v454, 0.0
    %v496 = vmax.f32 %v456, 0.0
    %v497 = vmax.f32 %v458, 0.0
    %v498 = vmax.f32 %v462, 0.0
    %v499 = vmax.f32 %v464, 0.0
    %v500 = vmax.f32 %v466, 0.0
    %v501 = vmax.f32 %v468, 0.0
    %502 = vset.pattern.permute.xlu0 1
    %503 = vperm.xlu0 %502, %v68
    %v504 = vpop.permute.xlu0 %503
    %506 = vset.pattern.permute.xlu0 1
    %507 = vperm.xlu0 %506, %v69
    %v508 = vpop.permute.xlu0 %507
    %510 = vset.pattern.permute.xlu0 1
    %511 = vperm.xlu0 %510, %v70
    %v512 = vpop.permute.xlu0 %511
    %514 = vset.pattern.permute.xlu0 1
    %515 = vperm.xlu0 %514, %v71
    %v516 = vpop.permute.xlu0 %515
    %518 = vset.pattern.permute.xlu0 1
    %519 = vperm.xlu0 %518, %v72
    %v520 = vpop.permute.xlu0 %519
    %522 = vset.pattern.permute.xlu0 1
    %523 = vperm.xlu0 %522, %v73
    %v524 = vpop.permute.xlu0 %523
    %526 = vset.pattern.permute.xlu0 1
    %527 = vperm.xlu0 %526, %v74
    %v528 = vpop.permute.xlu0 %527
    %530 = vset.pattern.permute.xlu0 1
    %531 = vperm.xlu0 %530, %v75
    %v532 = vpop.permute.xlu0 %531
    %534 = vset.pattern.permute.xlu0 1
    %535 = vperm.xlu0 %534, %v76
    %v536 = vpop.permute.xlu0 %535
    %538 = vset.pattern.permute.xlu0 1
    %539 = vperm.xlu0 %538, %v77
    %v540 = vpop.permute.xlu0 %539
    %542 = vset.pattern.permute.xlu0 1
    %543 = vperm.xlu0 %542, %v78
    %v544 = vpop.permute.xlu0 %543
    %546 = vset.pattern.permute.xlu0 1
    %547 = vperm.xlu0 %546, %v79
    %v548 = vpop.permute.xlu0 %547
    %550 = vset.pattern.permute.xlu0 1
    %551 = vperm.xlu0 %550, %v80
    %v552 = vpop.permute.xlu0 %551
    %554 = vset.pattern.permute.xlu0 1
    %555 = vperm.xlu0 %554, %v81
    %v556 = vpop.permute.xlu0 %555
    %558 = vset.pattern.permute.xlu0 1
    %559 = vperm.xlu0 %558, %v82
    %v560 = vpop.permute.xlu0 %559
    %562 = vset.pattern.permute.xlu0 1
    %563 = vperm.xlu0 %562, %v83
    %v564 = vpop.permute.xlu0 %563
    %v566 = vmul.f32 %v470, %v504
    %v567 = vmul.f32 %v471, %v504
    %v568 = vmul.f32 %v472, %v508
    %v569 = vmul.f32 %v473, %v508
    %v570 = vmul.f32 %v474, %v512
    %v571 = vmul.f32 %v475, %v512
    %v572 = vmul.f32 %v476, %v516
    %v573 = vmul.f32 %v477, %v516
    %v574 = vmul.f32 %v478, %v520
    %v575 = vmul.f32 %v479, %v520
    %v576 = vmul.f32 %v480, %v524
    %v577 = vmul.f32 %v481, %v524
    %v578 = vmul.f32 %v482, %v528
    %v579 = vmul.f32 %v483, %v528
    %v580 = vmul.f32 %v484, %v532
    %v581 = vmul.f32 %v485, %v532
    %v582 = vmul.f32 %v486, %v536
    %v583 = vmul.f32 %v487, %v536
    %v584 = vmul.f32 %v488, %v540
    %v585 = vmul.f32 %v489, %v540
    %v586 = vmul.f32 %v490, %v544
    %v587 = vmul.f32 %v491, %v544
    %v588 = vmul.f32 %v492, %v548
    %v589 = vmul.f32 %v493, %v548
    %v590 = vmul.f32 %v494, %v552
    %v591 = vmul.f32 %v495, %v552
    %v592 = vmul.f32 %v496, %v556
    %v593 = vmul.f32 %v497, %v556
    %v594 = vmul.f32 %v498, %v560
    %v595 = vmul.f32 %v499, %v560
    %v596 = vmul.f32 %v500, %v564
    %v597 = vmul.f32 %v501, %v564
    %v598 = vadd.f32 %v566, %v568
    %v599 = vadd.f32 %v598, %v570
    %v600 = vadd.f32 %v599, %v572
    %v601 = vadd.f32 %v600, %v574
    %v602 = vadd.f32 %v601, %v576
    %v603 = vadd.f32 %v602, %v578
    %v604 = vadd.f32 %v603, %v580
    %v605 = vadd.f32 %v604, %v582
    %v606 = vadd.f32 %v605, %v584
    %v607 = vadd.f32 %v606, %v586
    %v608 = vadd.f32 %v607, %v588
    %v609 = vadd.f32 %v608, %v590
    %v610 = vadd.f32 %v609, %v592
    %v611 = vadd.f32 %v610, %v594
    %v612 = vadd.f32 %v611, %v596
    %v613 = vrot.slane %v612, 4
    %v614 = vadd.f32 %v612, %v613
    %v615 = vrot.slane %v614, 2
    %v616 = vadd.f32 %v614, %v615
    %v617 = vrot.slane %v616, 1
    %v618 = vadd.f32 %v616, %v617
    %v619 = vadd.f32 %v567, %v569
    %v620 = vadd.f32 %v619, %v571
    %v621 = vadd.f32 %v620, %v573
    %v622 = vadd.f32 %v621, %v575
    %v623 = vadd.f32 %v622, %v577
    %v624 = vadd.f32 %v623, %v579
    %v625 = vadd.f32 %v624, %v581
    %v626 = vadd.f32 %v625, %v583
    %v627 = vadd.f32 %v626, %v585
    %v628 = vadd.f32 %v627, %v587
    %v629 = vadd.f32 %v628, %v589
    %v630 = vadd.f32 %v629, %v591
    %v631 = vadd.f32 %v630, %v593
    %v632 = vadd.f32 %v631, %v595
    %v633 = vadd.f32 %v632, %v597
    %v634 = vrot.slane %v633, 4
    %v635 = vadd.f32 %v633, %v634
    %v636 = vrot.slane %v635, 2
    %v637 = vadd.f32 %v635, %v636
    %v638 = vrot.slane %v637, 1
    %v639 = vadd.f32 %v637, %v638
    %s640 = sld [smem:[#allocation2]]
    %v641 = vstv %s640
    %v642 = vadd.f32 %v618, %v641
    %v643 = vadd.f32 %v639, %v641
    %v644 = vsub.f32 0.0, %v642
    %v645 = vsub.f32 0.0, %v643
    %v646 = vmul.f32 %v644, 1.442695
    %v647 = vpow.pop %v646
    %v648 = vmul.f32 %v645, 1.442695
    %v649 = vpow.pop %v648
    %v650 = vadd.f32 %v647, 1.0
    %v651 = vadd.f32 %v649, 1.0
    %v652 = vrcp.pop %v650
    %v653 = vrcp.pop %v651
    %v656 = vcombine.low %v652, %v653
    %v658 = vunpack.c.l.s4 1966171168
    %v659 = vunpack.c.0.s8 %v658
    %v660 = vlaneseq
    %v661 = vshrl.u32 %v660, 7
    %v662 = vsub.s32 %v659, %v661
    %v663 = vrot.slane %v656, %v662
    %v665 = vunpack.c.l.s4 1966171168
    %v666 = vunpack.c.0.s8 %v665
    %v667 = vlaneseq
    %v668 = vshrl.u32 %v667, 7
    %v669 = vsub.s32 %v666, %v668
    %v670 = vrot.slane %v663, %v669
    %v672 = vlaneseq
    %vm673 = vcmp.ge.s32.totalorder %v672, 0
    %vm674 = vcmp.lt.s32.totalorder %v672, 256
    %vm675 = vmand %vm673, %vm674
    %676 = vst.msk [vmem:[#allocation3] sm:$0x3] %vm675, %v670
    // Predicated region
    $region18: #{tpu_custom_call.1} parent=1 // pred_check
      _
    $region19: #{tpu_custom_call.1} parent=1 // pred_check_branch
      %678 = sbr.rel (0) target = $region21
    $region20: #{tpu_custom_call.1} parent=1 // pred_region
      %s680 = ssub.s32 32, 32
      %681 = vsyncadd [#allocation4], %s680
      %s683 = sshll.u32 [#allocation3], 4
      %s684 = int_to_ptr.vmem [resolvable:$true] %s683
      %686 = dma.vmem_to_hbm [thread:$0]  %s684, 32, %s4, [#allocation4]
    $region21: #{tpu_custom_call.1} parent=1 // pred_fallthru
      _
    // Predicated region
    $region22: #{tpu_custom_call.1} parent=1 // pred_check
      _
    $region23: #{tpu_custom_call.1} parent=1 // pred_check_branch
      %688 = sbr.rel (0) target = $region25
    $region24: #{tpu_custom_call.1} parent=1 // pred_region
      %689 = dma.done [#allocation4], 32
    $region25: #{tpu_custom_call.1} parent=1 // pred_fallthru
      _
    %690 = vsyncpa [#allocation4], 1

</llo_original>
